<compile_context>
chip_gen: v6e
topology: v6e:2x2x1
jax: 0.10.0
libtpu: 0.0.40
codegen_flags: <defaults>
</compile_context>

<pallas_src>
import jax
import jax.numpy as jnp
from jax.experimental import pallas as pl
from jax.experimental.pallas import tpu as pltpu


_VMEM_LIMIT = 32 * 1024 * 1024     # safe on v5e/v6e (128 MiB) and v7x (64 MiB)
_MAX_TILE_ROWS = 2048              # output-row tile target (~0.5-2 MiB blocks)


# -----------------------------------------------------------------------------
# Pallas kernels
# -----------------------------------------------------------------------------
def _make_conv_kernel(shifts, tm, row_tiles):
    """Multi-tap matmul + bias + ReLU kernel.

    x_ref: (1, R, K)     bf16  -- whole padded, flattened image (resident)
    w_ref: (T, K, Cout)  bf16  -- per-tap weight matrices
    b_ref: (1, Cout)     f32
    o_ref: (1, tm, Cout) bf16  -- one tile of flattened output rows
    """

    def kernel(x_ref, w_ref, b_ref, o_ref):
        cout = o_ref.shape[2]
        if row_tiles == 1:
            base = 0                                   # static: whole image
        else:
            base = pl.multiple_of(pl.program_id(1) * tm, tm)
        acc = jnp.zeros((tm, cout), jnp.float32)
        for t, s in enumerate(shifts):                 # unrolled tap loop
            acc = acc + jnp.dot(
                x_ref[0, pl.ds(base + s, tm), :],      # shifted row window
                w_ref[t],
                preferred_element_type=jnp.float32)
        acc = acc + b_ref[...]                         # f32 bias
        o_ref[0] = jnp.maximum(acc, 0.0).astype(o_ref.dtype)

    return kernel


def _maxpool2x2_kernel(x_ref, o_ref):
    # x_ref: (1, Ho, 2*Wo, 2*C) -- dim2 = [even-y rows | odd-y rows],
    #                              dim3 = [even-x chans | odd-x chans]
    # o_ref: (1, Ho, Wo, C)
    wo, c = o_ref.shape[2], o_ref.shape[3]
    xb = x_ref[0]
    m = jnp.maximum(xb[:, :wo, :], xb[:, wo:, :])      # max over y-pair
    o_ref[0] = jnp.maximum(m[:, :, :c], m[:, :, c:])   # max over x-pair


# -----------------------------------------------------------------------------
# Wrappers
# -----------------------------------------------------------------------------
def _pick_row_tile(h, row_w):
    """Largest divisor of H whose row tile (h_tile*row_w) fits the target."""
    if h * row_w <= _MAX_TILE_ROWS:
        return h
    for d in range(h, 0, -1):
        if h % d == 0 and d * row_w <= _MAX_TILE_ROWS and (d * row_w) % 8 == 0:
            return d
    return h


def conv3x3_relu(x, w, b):
    """x: (N,H,W,Cin) NHWC, w: (3,3,Cin,Cout), b: (Cout,) -> (N,H,W,Cout) bf16."""
    n, h, wdt, cin = x.shape
    cout = w.shape[-1]

    if cin <= 16:
        # First layer: fold the 9 taps into K (im2col, K=9*Cin) -> one big dot.
        # Input has only `cin` channels so the duplication is negligible.
        xp = jnp.pad(x, ((0, 0), (1, 1), (1, 1), (0, 0)))
        cols = [xp[:, dy:dy + h, dx:dx + wdt, :]
                for dy in range(3) for dx in range(3)]
        x_in = jnp.concatenate(cols, axis=-1).reshape(n, h * wdt, 9 * cin)
        w_k = w.reshape(1, 9 * cin, cout)
        shifts = (0,)
        row_w = wdt                      # output row width (no garbage cols)
    else:
        # Deep layers: pad once, flatten (H,W); taps are row shifts in-kernel.
        wp = wdt + 2
        xp = jnp.pad(x, ((0, 0), (1, 2), (1, 1), (0, 0)))     # (n, h+3, wp, cin)
        x_in = xp.reshape(n, (h + 3) * wp, cin)
        w_k = w.reshape(9, cin, cout)
        shifts = tuple(dy * wp + dx for dy in range(3) for dx in range(3))
        row_w = wp                       # 2 garbage cols per row, sliced below

    x_in = x_in.astype(jnp.bfloat16)
    w_k = w_k.astype(jnp.bfloat16)
    b2 = b.reshape(1, cout).astype(jnp.float32)

    m = h * row_w                        # flattened output rows per image
    h_tile = _pick_row_tile(h, row_w)
    tm = h_tile * row_w
    row_tiles = h // h_tile

    r = x_in.shape[1]
    ntap = w_k.shape[0]
    kdim = w_k.shape[1]

    cost = pl.CostEstimate(
        flops=2 * n * h * wdt * 9 * cin * cout,
        transcendentals=0,
        bytes_accessed=x_in.size * 2 + w_k.size * 2 + b2.size * 4
        + n * m * cout * 2,
    )

    out = pl.pallas_call(
        _make_conv_kernel(shifts, tm, row_tiles),
        out_shape=jax.ShapeDtypeStruct((n, m, cout), jnp.bfloat16),
        grid=(n, row_tiles),
        in_specs=[
            pl.BlockSpec((1, r, kdim), lambda i, j: (i, 0, 0)),
            pl.BlockSpec((ntap, kdim, cout), lambda i, j: (0, 0, 0)),
            pl.BlockSpec((1, cout), lambda i, j: (0, 0)),
        ],
        out_specs=pl.BlockSpec((1, tm, cout), lambda i, j: (i, j, 0)),
        compiler_params=pltpu.CompilerParams(
            dimension_semantics=("parallel", "parallel"),
            vmem_limit_bytes=_VMEM_LIMIT),
        cost_estimate=cost,
    )(x_in, w_k, b2)

    out = out.reshape(n, h, row_w, cout)
    if row_w != wdt:
        out = out[:, :, :wdt, :]         # drop wrap-around garbage columns
    return out


def maxpool2x2(x):
    """x: (N,H,W,C) -> (N,H//2,W//2,C); kernel_size=2, stride=2 (floor)."""
    n, h, wdt, c = x.shape
    ho, wo = h // 2, wdt // 2
    if (h, wdt) != (2 * ho, 2 * wo):     # floor mode: drop trailing row/col
        x = x[:, :2 * ho, :2 * wo, :]
    # Free reshape: dim2 = [even-y | odd-y] rows, dim3 = [even-x | odd-x] chans.
    xr = x.reshape(n, ho, 2 * wo, 2 * c)
    return pl.pallas_call(
        _maxpool2x2_kernel,
        out_shape=jax.ShapeDtypeStruct((n, ho, wo, c), x.dtype),
        grid=(n,),
        in_specs=[pl.BlockSpec((1, ho, 2 * wo, 2 * c), lambda i: (i, 0, 0, 0))],
        out_specs=pl.BlockSpec((1, ho, wo, c), lambda i: (i, 0, 0, 0)),
        compiler_params=pltpu.CompilerParams(
            dimension_semantics=("parallel",),
            vmem_limit_bytes=_VMEM_LIMIT),
    )(xr)


# -----------------------------------------------------------------------------
# VGG16 trunk
# -----------------------------------------------------------------------------
# (num_conv_blocks, in_channels, out_channels) -- matches make_layer calls.
_CFG = [(2, 3, 64), (2, 64, 128), (3, 128, 256), (3, 256, 512), (3, 512, 512)]


def init_params(key):
    """Deterministic synthetic weights (He-style), HWIO layout, bf16 weights."""
    # TODO(synk): reference module optionally loads torchvision vgg16 weights
    # from disk; deterministic synthetic init is used instead (no checkpoint).
    params = []
    for (nblocks, cin, cout) in _CFG:
        layer = []
        c_in = cin
        for _ in range(nblocks):
            key, kw = jax.random.split(key)
            w = jax.random.normal(kw, (3, 3, c_in, cout), jnp.float32)
            w = (w * jnp.sqrt(2.0 / (9.0 * c_in))).astype(jnp.bfloat16)
            layer.append((w, jnp.zeros((cout,), jnp.float32)))
            c_in = cout
        params.append(layer)
    return params


@jax.jit
def vgg16_forward(x_nchw, params):
    """Mirrors VGG16.forward: returns (layer5_out, [layer3_out, layer4_out])."""
    x = jnp.transpose(x_nchw, (0, 2, 3, 1)).astype(jnp.bfloat16)  # NCHW -> NHWC
    residual = []
    for li, layer_params in enumerate(params):
        for (w, b) in layer_params:
            x = conv3x3_relu(x, w, b)
        x = maxpool2x2(x)
        if li in (2, 3):  # after layer3 and layer4
            residual.append(jnp.transpose(x.astype(jnp.float32), (0, 3, 1, 2)))
    out = jnp.transpose(x.astype(jnp.float32), (0, 3, 1, 2))      # back to NCHW
    return out, residual


# -----------------------------------------------------------------------------
def _conv_relu_reference(x, w, b):
    y = jax.lax.conv_general_dilated(
        x, w, window_strides=(1, 1), padding="SAME",
        dimension_numbers=("NHWC", "HWIO", "NHWC"))
    return jnp.maximum(y + b, 0.0)


if __name__ == "__main__":
    key = jax.random.PRNGKey(0)
    k_x, k_p, k1, k2, k3, k4 = jax.random.split(key, 6)

    # --- spot-checks against pure-JAX references (loose tol: bf16 operands) --
    # (a) first-layer path (taps folded into K): Cin=3
    xa = jax.random.normal(k1, (1, 8, 8, 3), jnp.float32)
    wa = jax.random.normal(k2, (3, 3, 3, 64), jnp.float32) * 0.2
    ba = jax.random.normal(k3, (64,), jnp.float32) * 0.1
    got = conv3x3_relu(xa, wa, ba).astype(jnp.float32)
    ref = _conv_relu_reference(xa, wa, ba)
    assert jnp.allclose(got, ref, atol=0.1, rtol=0.1), "conv (im2col path)"

    # (b) deep-layer path (in-kernel shifted taps): Cin=64
    xb = jax.random.normal(k4, (1, 8, 8, 64), jnp.float32)
    wb = jax.random.normal(k2, (3, 3, 64, 128), jnp.float32) * 0.05
    bb = jax.random.normal(k3, (128,), jnp.float32) * 0.1
    got = conv3x3_relu(xb, wb, bb).astype(jnp.float32)
    ref = _conv_relu_reference(xb, wb, bb)
    assert jnp.allclose(got, ref, atol=0.1, rtol=0.1), "conv (shift path)"

    # (c) maxpool
    xc = jax.random.normal(k1, (2, 4, 4, 128), jnp.float32)
    got = maxpool2x2(xc)
    ref = jnp.max(xc.reshape(2, 2, 2, 2, 2, 128), axis=(2, 4))
    assert jnp.allclose(got, ref), "maxpool mismatch"

    # --- full VGG16 trunk forward --------------------------------------------
    # NCHW, 3 input channels, 32x32 spatial so five 2x2 maxpools end at 1x1.
    x = jax.random.normal(k_x, (2, 3, 32, 32), jnp.float32)
    params = init_params(k_p)

    out, residual = vgg16_forward(x, params)
    jax.block_until_ready((out, residual))

    assert out.shape == (2, 512, 1, 1), out.shape
    assert residual[0].shape == (2, 256, 4, 4), residual[0].shape
    assert residual[1].shape == (2, 512, 2, 2), residual[1].shape

    print("KERNEL_OK")
</pallas_src>

<mosaic_0001>
module attributes {stable_mosaic.version = 11 : i64} {
  func.func @kernel(%arg0: i32, %arg1: i32, %arg2: memref<1x64x27xbf16, #tpu.memory_space<vmem>>, %arg3: memref<1x27x64xbf16, #tpu.memory_space<vmem>>, %arg4: memref<1x64xf32, #tpu.memory_space<vmem>>, %arg5: memref<1x64x64xbf16, #tpu.memory_space<vmem>>) attributes {dimension_semantics = [#tpu.dimension_semantics<parallel>, #tpu.dimension_semantics<parallel>], iteration_bounds = array<i64: 1, 1>, scalar_prefetch = 0 : i64, scratch_operands = 0 : i64, tpu.core_type = #tpu.core_type<tc>, window_params = [{transform_indices = @transform_0, window_bounds = array<i64: 1, 64, 27>}, {pipeline_mode = #tpu.pipeline_mode<synchronous>, transform_indices = @transform_1, window_bounds = array<i64: 1, 27, 64>}, {pipeline_mode = #tpu.pipeline_mode<synchronous>, transform_indices = @transform_2, window_bounds = array<i64: 1, 64>}, {transform_indices = @transform_3, window_bounds = array<i64: 1, 64, 64>}]} {
    %cst = arith.constant 0.000000e+00 : f32
    %0 = vector.broadcast %cst : f32 to vector<64x64xf32>
    %c0 = arith.constant 0 : index
    %c0_0 = arith.constant 0 : index
    %c0_1 = arith.constant 0 : index
    %1 = vector.load %arg2[%c0, %c0_0, %c0_1] : memref<1x64x27xbf16, #tpu.memory_space<vmem>>, vector<1x64x27xbf16>
    %2 = vector.shape_cast %1 : vector<1x64x27xbf16> to vector<64x27xbf16>
    %c0_2 = arith.constant 0 : index
    %c0_3 = arith.constant 0 : index
    %c0_4 = arith.constant 0 : index
    %3 = vector.load %arg3[%c0_2, %c0_3, %c0_4] : memref<1x27x64xbf16, #tpu.memory_space<vmem>>, vector<1x27x64xbf16>
    %4 = vector.shape_cast %3 : vector<1x27x64xbf16> to vector<27x64xbf16>
    %cst_5 = arith.constant dense<0.000000e+00> : vector<64x64xf32>
    %5 = tpu.matmul %2, %4, %cst_5 {dimension_numbers = #tpu.dot_dimension_numbers<[1], [0], [0], [1], [0, 0, 1, 1], [], []>} : vector<64x27xbf16>, vector<27x64xbf16>, vector<64x64xf32> -> vector<64x64xf32>
    %6 = arith.addf %0, %5 : vector<64x64xf32>
    %c0_6 = arith.constant 0 : index
    %c0_7 = arith.constant 0 : index
    %7 = vector.load %arg4[%c0_6, %c0_7] : memref<1x64xf32, #tpu.memory_space<vmem>>, vector<1x64xf32>
    %8 = vector.broadcast %7 : vector<1x64xf32> to vector<64x64xf32>
    %9 = arith.addf %6, %8 : vector<64x64xf32>
    %cst_8 = arith.constant 0.000000e+00 : f32
    %10 = vector.broadcast %cst_8 : f32 to vector<64x64xf32>
    %11 = arith.maximumf %9, %10 : vector<64x64xf32>
    %12 = arith.truncf %11 : vector<64x64xf32> to vector<64x64xbf16>
    %c0_9 = arith.constant 0 : index
    %c0_10 = arith.constant 0 : index
    %c0_11 = arith.constant 0 : index
    %13 = vector.load %arg5[%c0_9, %c0_10, %c0_11] : memref<1x64x64xbf16, #tpu.memory_space<vmem>>, vector<1x64x64xbf16>
    %14 = vector.shape_cast %13 : vector<1x64x64xbf16> to vector<64x64xbf16>
    %15 = vector.shape_cast %12 : vector<64x64xbf16> to vector<1x64x64xbf16>
    tpu.vector_store %arg5[%c0_9, %c0_10, %c0_11], %15 {strides = array<i32>} : memref<1x64x64xbf16, #tpu.memory_space<vmem>>, vector<1x64x64xbf16>,
    return
  }
  func.func @transform_0(%arg0: i32, %arg1: i32) -> (i32, i32, i32) {
    %c0_i32 = arith.constant 0 : i32
    %c0_i32_0 = arith.constant 0 : i32
    %c0_i32_1 = arith.constant 0 : i32
    return %arg0, %c0_i32, %c0_i32_0 : i32, i32, i32
  }
  func.func @transform_1(%arg0: i32, %arg1: i32) -> (i32, i32, i32) {
    %c0_i32 = arith.constant 0 : i32
    %c0_i32_0 = arith.constant 0 : i32
    %c0_i32_1 = arith.constant 0 : i32
    %c0_i32_2 = arith.constant 0 : i32
    return %c0_i32, %c0_i32_0, %c0_i32_1 : i32, i32, i32
  }
  func.func @transform_2(%arg0: i32, %arg1: i32) -> (i32, i32) {
    %c0_i32 = arith.constant 0 : i32
    %c0_i32_0 = arith.constant 0 : i32
    %c0_i32_1 = arith.constant 0 : i32
    return %c0_i32, %c0_i32_0 : i32, i32
  }
  func.func @transform_3(%arg0: i32, %arg1: i32) -> (i32, i32, i32) {
    %c0_i32 = arith.constant 0 : i32
    %c0_i32_0 = arith.constant 0 : i32
    return %arg0, %arg1, %c0_i32 : i32, i32, i32
  }
}

</mosaic_0001>

<llo_original>
// kernel: tpu_custom_call.1
$region0: #{tpu_custom_call.1}
  #allocation0 [shape = 'u32[]', space=smem, size = 0x4, offset = 0x4, fixed_abs, tag = 'smem constant byte address 0x4 - core index']
  #allocation1 [shape = 'u32[144,128]{1,0:T(1,128)}', space=vmem, size = 0x12000, scoped, tag = 'internal scratch']
  %s0 = inlined_call_operand.vmem [shape: bf16[1,64,27], index: 0, kind: input, shape index: {}]
  %s1 = inlined_call_operand.vmem [shape: bf16[1,27,64], index: 1, kind: input, shape index: {}]
  %s2 = inlined_call_operand.vmem [shape: f32[1,64], index: 2, kind: input, shape index: {}]
  %s3 = inlined_call_operand.hbm [shape: bf16[1,64,64], index: 3, kind: output, shape index: {}]
  %s4 = sld [smem:[#allocation0]]
  $region22: #{tpu_custom_call.1} parent=0
    _
  %s6 = ssub.s32 1, %s4
  %s7 = scalar_select 0, %s6, %s4
  $region1: #{tpu_custom_call.1} parent=0
    #allocation2 [shape = 'u8[16384]{0}', space=vmem, size = 0x4000, scoped, tag = 'output window, operand 0, single buffered']
    #allocation3 [shape = 's32[1]{0}', space=sflag, size = 0x4, scoped, tag = 'scoped memory for tpu_custom_call.1']
    %8 = vsyncpa [#allocation3], 0
    // Predicated region
    $region2: #{tpu_custom_call.1} parent=1 // pred_check
      _
    $region3: #{tpu_custom_call.1} parent=1 // pred_check_branch
      %10 = sbr.rel (0) target = $region5
    $region4: #{tpu_custom_call.1} parent=1 // pred_region
      _
    $region5: #{tpu_custom_call.1} parent=1 // pred_fallthru
      _
    // Predicated region
    $region6: #{tpu_custom_call.1} parent=1 // pred_check
      _
    $region7: #{tpu_custom_call.1} parent=1 // pred_check_branch
      %12 = sbr.rel (0) target = $region9
    $region8: #{tpu_custom_call.1} parent=1 // pred_region
      _
    $region9: #{tpu_custom_call.1} parent=1 // pred_fallthru
      _
    // Predicated region
    $region10: #{tpu_custom_call.1} parent=1 // pred_check
      _
    $region11: #{tpu_custom_call.1} parent=1 // pred_check_branch
      %14 = sbr.rel (0) target = $region13
    $region12: #{tpu_custom_call.1} parent=1 // pred_region
      _
    $region13: #{tpu_custom_call.1} parent=1 // pred_fallthru
      _
    %v16 = vld [vmem:[%s0] sm:$0xf]
    %v17 = vld [vmem:[%s0 + $0x4] sm:$0xf]
    %v18 = vld [vmem:[%s0 + $0x8] sm:$0xf]
    %v19 = vld [vmem:[%s0 + $0xc] sm:$0xf]
    %v20 = vld [vmem:[%s0 + $0x10] sm:$0xf]
    %v21 = vld [vmem:[%s0 + $0x14] sm:$0xf]
    %v22 = vld [vmem:[%s0 + $0x18] sm:$0xf]
    %v23 = vld [vmem:[%s0 + $0x1c] sm:$0xf]
    %v24 = vld [vmem:[%s1] sm:$0xf]
    %v25 = vld [vmem:[%s1 + $0x4] sm:$0xf]
    %v26 = vld [vmem:[%s1 + $0x8] sm:$0xf]
    %v27 = vld [vmem:[%s1 + $0xc] sm:$0x3]
    %v28 = vld [vmem:[%s2] sm:$0x1]
    %v30 = vlaneseq
    %v31 = vshrl.u32 %v30, 7
    %v32 = vsub.s32 0, %v31
    %v33 = vrot.slane %v28, %v32
    %v43 = vunpack.c.l.b16 %v16
    %v44 = vunpack.c.l.b16 %v17
    %v45 = vunpack.c.l.b16 %v18
    %v46 = vunpack.c.l.b16 %v19
    %v47 = vunpack.c.l.b16 %v20
    %v48 = vunpack.c.l.b16 %v21
    %v49 = vunpack.c.l.b16 %v22
    %v50 = vunpack.c.l.b16 %v23
    %v51 = vpack.c.b16 %v44, %v43
    %v52 = vpack.c.b16 %v46, %v45
    %v53 = vpack.c.b16 %v48, %v47
    %v54 = vpack.c.b16 %v50, %v49
    %v59 = vunpack.c.l.b16 %v24
    %v60 = vunpack.c.l.b16 %v25
    %v61 = vunpack.c.l.b16 %v26
    %v62 = vunpack.c.l.b16 %v27
    %v63 = vpack.c.b16 %v60, %v59
    %v64 = vpack.c.b16 %v62, %v61
    %vm66 = vcmask 220160
    %v68 = vsel %vm66, %v51, 0
    %v71 = vsel %vm66, %v52, 0
    %v74 = vsel %vm66, %v53, 0
    %v77 = vsel %vm66, %v54, 0
    %vm79 = vcmask 1044480
    %vm80 = vcmask 1045504
    %v81 = vsel %vm79, 4294967295, 65535
    %v82 = vsel %vm80, %v81, 0
    %v84 = vand.u32 %v64, %v82
    %86 = vmatprep.subr.bf16.mxu0 0
    %87 = vmatpush1.bf16.msra.mxu0 0
    %88 = vmatprep.subr.bf16.mxu0 0
    %89 = vmatpush1.bf16.msra.mxu0 0
    %90 = vmatprep.subr.bf16.mxu0 0
    %91 = vmatpush1.bf16.msra.mxu0 0
    %92 = vmatprep.subr.bf16.mxu0 0
    %93 = vmatpush1.bf16.msra.mxu0 0
    %94 = vmatprep.subr.bf16.mxu0 0
    %95 = vmatpush1.bf16.msra.mxu0 0
    %96 = vmatprep.subr.bf16.mxu0 0
    %97 = vmatpush1.bf16.msra.mxu0 0
    %98 = vmatprep.subr.bf16.mxu0 0
    %99 = vmatpush1.bf16.msra.mxu0 %v84
    %100 = vmatprep.subr.bf16.mxu0 0
    %101 = vmatpush1.bf16.msra.mxu0 %v63
    %102 = vmatprep.subr.bf16.mxu0 0
    %103 = vmatpush2.bf16.msra.mxu0 0
    %104 = vmatprep.subr.bf16.mxu0 0
    %105 = vmatpush2.bf16.msra.mxu0 0
    %106 = vmatprep.subr.bf16.mxu0 0
    %107 = vmatpush2.bf16.msra.mxu0 0
    %108 = vmatprep.subr.bf16.mxu0 0
    %109 = vmatpush2.bf16.msra.mxu0 0
    %110 = vmatprep.subr.bf16.mxu0 0
    %111 = vmatpush2.bf16.msra.mxu0 0
    %112 = vmatprep.subr.bf16.mxu0 0
    %113 = vmatpush2.bf16.msra.mxu0 0
    %114 = vmatprep.subr.bf16.mxu0 0
    %115 = vmatpush2.bf16.msra.mxu0 0
    %116 = vmatprep.subr.bf16.mxu0 0
    %117 = vmatpush2.bf16.msra.mxu0 0
    %118 = vmatprep.mubr.bf16.mxu0 0
    %119 = vmatmul.mubr.bf16.gmra.mxu0 %v68
    %v120 = vpop.f32.mrf.mxu0
    %v121 = vadd.f32 %v33, %v120
    %v122 = vpop.f32.mrf.mxu0
    %v123 = vpop.f32.mrf.mxu0
    %v124 = vadd.f32 %v33, %v123
    %v125 = vpop.f32.mrf.mxu0
    %126 = vmatprep.mubr.bf16.mxu0 0
    %127 = vmatmul.mubr.bf16.gmra.mxu0 %v71
    %v128 = vpop.f32.mrf.mxu0
    %v129 = vadd.f32 %v33, %v128
    %v130 = vpop.f32.mrf.mxu0
    %v131 = vpop.f32.mrf.mxu0
    %v132 = vadd.f32 %v33, %v131
    %v133 = vpop.f32.mrf.mxu0
    %134 = vmatprep.mubr.bf16.mxu0 0
    %135 = vmatmul.mubr.bf16.gmra.mxu0 %v74
    %v136 = vpop.f32.mrf.mxu0
    %v137 = vadd.f32 %v33, %v136
    %v138 = vpop.f32.mrf.mxu0
    %v139 = vpop.f32.mrf.mxu0
    %v140 = vadd.f32 %v33, %v139
    %v141 = vpop.f32.mrf.mxu0
    %142 = vmatprep.mubr.bf16.mxu0 0
    %143 = vmatmul.mubr.bf16.gmra.mxu0 %v77
    %v144 = vpop.f32.mrf.mxu0
    %v145 = vadd.f32 %v33, %v144
    %v146 = vpop.f32.mrf.mxu0
    %v147 = vpop.f32.mrf.mxu0
    %v148 = vadd.f32 %v33, %v147
    %v149 = vpop.f32.mrf.mxu0
    %150 = vdwg.mxu0
    %v151 = vmax.f32 %v121, 0.0
    %v152 = vmax.f32 %v124, 0.0
    %v153 = vmax.f32 %v129, 0.0
    %v154 = vmax.f32 %v132, 0.0
    %v155 = vmax.f32 %v137, 0.0
    %v156 = vmax.f32 %v140, 0.0
    %v157 = vmax.f32 %v145, 0.0
    %v158 = vmax.f32 %v148, 0.0
    %v159 = vpack.c.bf16 %v152, %v151
    %v160 = vpack.c.bf16 %v154, %v153
    %v161 = vpack.c.bf16 %v156, %v155
    %v162 = vpack.c.bf16 %v158, %v157
    %v167 = vunpack.c.l.b16 %v159
    %v168 = vunpack.c.h.b16 %v159
    %v169 = vunpack.c.l.b16 %v160
    %v170 = vunpack.c.h.b16 %v160
    %v171 = vunpack.c.l.b16 %v161
    %v172 = vunpack.c.h.b16 %v161
    %v173 = vunpack.c.l.b16 %v162
    %v174 = vunpack.c.h.b16 %v162
    %v175 = vpack.c.b16 %v167, %v167
    %v176 = vpack.c.b16 %v168, %v168
    %v177 = vpack.c.b16 %v169, %v169
    %v178 = vpack.c.b16 %v170, %v170
    %v179 = vpack.c.b16 %v171, %v171
    %v180 = vpack.c.b16 %v172, %v172
    %v181 = vpack.c.b16 %v173, %v173
    %v182 = vpack.c.b16 %v174, %v174
    %vm191 = vcmask 519168
    %192 = vst.msk [vmem:[#allocation2] sm:$0xf] %vm191, %v175
    %193 = vst.msk [vmem:[#allocation2 + $0x4] sm:$0xf] %vm191, %v176
    %194 = vst.msk [vmem:[#allocation2 + $0x8] sm:$0xf] %vm191, %v177
    %195 = vst.msk [vmem:[#allocation2 + $0xc] sm:$0xf] %vm191, %v178
    %196 = vst.msk [vmem:[#allocation2 + $0x10] sm:$0xf] %vm191, %v179
    %197 = vst.msk [vmem:[#allocation2 + $0x14] sm:$0xf] %vm191, %v180
    %198 = vst.msk [vmem:[#allocation2 + $0x18] sm:$0xf] %vm191, %v181
    %199 = vst.msk [vmem:[#allocation2 + $0x1c] sm:$0xf] %vm191, %v182
    // Predicated region
    $region14: #{tpu_custom_call.1} parent=1 // pred_check
      _
    $region15: #{tpu_custom_call.1} parent=1 // pred_check_branch
      %201 = sbr.rel (0) target = $region17
    $region16: #{tpu_custom_call.1} parent=1 // pred_region
      %s203 = ssub.s32 512, 512
      %204 = vsyncadd [#allocation3], %s203
      %s205 = sshll.u32 [#allocation2], 4
      %s206 = int_to_ptr.vmem [resolvable:$true] %s205
      %211 = dma.vmem_to_hbm [thread:$0]  %s206, 512, %s3, [#allocation3], 64, 64, 4
    $region17: #{tpu_custom_call.1} parent=1 // pred_fallthru
      _
    // Predicated region
    $region18: #{tpu_custom_call.1} parent=1 // pred_check
      _
    $region19: #{tpu_custom_call.1} parent=1 // pred_check_branch
      %213 = sbr.rel (0) target = $region21
    $region20: #{tpu_custom_call.1} parent=1 // pred_region
      %214 = dma.done [#allocation3], 512
    $region21: #{tpu_custom_call.1} parent=1 // pred_fallthru
      _
    %215 = vsyncpa [#allocation3], 1

</llo_original>
